<compile_context>
chip_gen: v5e
topology: v5e:2x2
jax: 0.10.0
libtpu: 0.0.40
codegen_flags: <defaults>
</compile_context>

<pallas_src>
import functools
import math

import jax
import jax.numpy as jnp
from jax.experimental import pallas as pl
from jax.experimental.pallas import tpu as pltpu


def _round_up(x, m):
    return (x + m - 1) // m * m


def _choose_tc(T, B, max_tc=16):
    """Pick a time-chunk size tc such that tc*B is a multiple of 8 (dense stores),
    minimizing padded trailing steps, tie-breaking toward larger chunks."""
    step = 8 // math.gcd(B, 8)            # tc must be a multiple of this
    candidates = list(range(step, max_tc + 1, step)) or [step]
    return min(candidates, key=lambda tc: ((-T) % tc, -tc))


def lsm_recurrent_kernel(curr_ref, wlsm_hbm, out_ref,
                         w_vmem, copy_sem, spk_s, syn_s, mem_s,
                         *, alpha, beta, th, tc):
    """One grid step == one chunk of `tc` time steps. State carried in VMEM scratch."""
    c = pl.program_id(0)

    @pl.when(c == 0)
    def _():
        # Single-buffered, kernel-lifetime copy of the recurrent weights
        # (one DMA total; avoids the double-buffer a constant BlockSpec would get).
        cp = pltpu.make_async_copy(wlsm_hbm, w_vmem, copy_sem)
        cp.start()
        cp.wait()
        spk_s[...] = jnp.zeros_like(spk_s)
        syn_s[...] = jnp.zeros_like(syn_s)
        mem_s[...] = jnp.zeros_like(mem_s)

    # Load state once per chunk; carry in registers across the unrolled steps.
    spk = spk_s[...]          # (B, Npad)
    syn = syn_s[...]
    mem = mem_s[...]
    # Loop-invariant MXU RHS: loaded once per chunk so the weight push can be
    # hoisted out of the unrolled serial spk -> dot -> spk chain.
    w = w_vmem[...]           # (Npad, Npad), resident for the whole kernel

    spks = []
    for i in range(tc):       # static unroll (tc is a Python int)
        # all-to-all recurrent contribution from previous spikes (MXU).
        # spk is exactly {0,1}, so casting to w.dtype (e.g. bf16) is lossless.
        rec = jnp.dot(spk.astype(w.dtype), w, preferred_element_type=jnp.float32)
        # fc1 current (with b1 + b_rec folded in) was precomputed outside the loop
        syn = alpha * syn + curr_ref[i] + rec
        # reset-by-subtraction; reset_t = (mem_{t-1} > th) == spk_{t-1}
        mem = beta * mem + syn - spk * th
        spk = (mem > th).astype(jnp.float32)
        spks.append(spk)

    # One dense (tc*B, Npad) writeback per chunk (off the critical path) instead
    # of tc sublane-masked per-step stores.
    out_ref[...] = jnp.concatenate(spks, axis=0)

    spk_s[...] = spk
    syn_s[...] = syn
    mem_s[...] = mem


def lsm_forward(x, Win, b1, Wlsm, brec, alpha, beta, th, *,
                max_tc=16, rec_weight_dtype=jnp.float32):
    """x: (B, T, C, H, W) float32. Returns spk_rec: (T, B, N) float32.

    rec_weight_dtype=jnp.bfloat16 is a perf knob (single-pass MXU, half the
    resident VMEM); default f32 keeps exact agreement with the f32 reference.
    """
    B, T, C, H, W = x.shape
    in_sz = C * H * W
    N = Win.shape[0]
    assert Win.shape == (N, in_sz) and Wlsm.shape == (N, N)

    # Pad the neuron dimension to full 128-lane width (unmasked vector ops).
    N_pad = max(_round_up(N, 128), 128)
    tc = _choose_tc(T, B, max_tc)
    T_pad = _round_up(T, tc)

    # ---- Hoisted feed-forward path (no recurrent-state dependence) -------------
    # One batched (B*T, in_sz) x (in_sz, N_pad) MXU matmul instead of T tiny ones.
    # HIGHEST precision: default reduced-precision f32 matmul could flip
    # near-threshold spikes that then cascade through the recurrence.
    x_flat = x.reshape(B, T, in_sz).astype(jnp.float32)
    win_t = jnp.zeros((in_sz, N_pad), jnp.float32).at[:, :N].set(
        Win.T.astype(jnp.float32))
    bias = jnp.zeros((N_pad,), jnp.float32).at[:N].set(
        (b1 + brec).astype(jnp.float32))
    curr_all = jnp.einsum('bti,io->tbo', x_flat, win_t,
                          precision=jax.lax.Precision.HIGHEST) + bias[None, None, :]
    if T_pad != T:
        # Zero-current padded trailing steps; they cannot affect earlier outputs
        # (forward recurrence) and are sliced away below.
        curr_all = jnp.pad(curr_all, ((0, T_pad - T), (0, 0), (0, 0)))

    # Recurrent weights, pre-transposed and lane-padded with zeros (padded
    # neurons never influence real neurons; their output is sliced away).
    wlsm_t = jnp.zeros((N_pad, N_pad), rec_weight_dtype).at[:N, :N].set(
        Wlsm.T.astype(rec_weight_dtype))

    # ---- Sequential recurrent kernel, chunked over time ------------------------
    kernel = functools.partial(lsm_recurrent_kernel, alpha=float(alpha),
                               beta=float(beta), th=float(th), tc=tc)

    # TODO(synk): on v7x, split B across the two TensorCores with a leading
    # "parallel" grid axis once B is large; at B=2 keep the batch fused.
    grid_spec = pltpu.PrefetchScalarGridSpec(
        num_scalar_prefetch=0,
        grid=(T_pad // tc,),
        in_specs=[
            pl.BlockSpec((tc, B, N_pad), lambda c: (c, 0, 0)),  # curr chunk
            pl.BlockSpec(memory_space=pl.ANY),                  # Wlsm^T stays in HBM
        ],
        out_specs=pl.BlockSpec((tc * B, N_pad), lambda c: (c, 0)),
        scratch_shapes=[
            pltpu.VMEM((N_pad, N_pad), rec_weight_dtype),  # resident recurrent W
            pltpu.SemaphoreType.DMA,                       # weight-copy semaphore
            pltpu.VMEM((B, N_pad), jnp.float32),           # spk state
            pltpu.VMEM((B, N_pad), jnp.float32),           # syn state
            pltpu.VMEM((B, N_pad), jnp.float32),           # mem state
        ],
    )

    spk_flat = pl.pallas_call(
        kernel,
        out_shape=jax.ShapeDtypeStruct((T_pad * B, N_pad), jnp.float32),
        grid_spec=grid_spec,
        compiler_params=pltpu.CompilerParams(
            dimension_semantics=("arbitrary",)),  # sequential: recurrent state carry
    )(curr_all, wlsm_t)

    return spk_flat.reshape(T_pad, B, N_pad)[:T, :, :N]


def lsm_reference(x, Win, b1, Wlsm, brec, alpha, beta, th):
    """Pure-JAX reference of the same dynamics (for correctness check)."""
    B, T, C, H, W = x.shape
    in_sz = C * H * W
    N = Win.shape[0]
    hi = jax.lax.Precision.HIGHEST
    x_flat = x.reshape(B, T, in_sz)
    spk = jnp.zeros((B, N), jnp.float32)
    syn = jnp.zeros((B, N), jnp.float32)
    mem = jnp.zeros((B, N), jnp.float32)
    recs = []
    for t in range(T):
        curr = jnp.dot(x_flat[:, t, :], Win.T, precision=hi) + b1
        rec = jnp.dot(spk, Wlsm.T, precision=hi) + brec
        reset = (mem > th).astype(jnp.float32)
        syn = alpha * syn + curr + rec
        mem = beta * mem + syn - reset * th
        spk = (mem > th).astype(jnp.float32)
        recs.append(spk)
    return jnp.stack(recs)


if __name__ == "__main__":
    # Small shapes consistent with the module's forward:
    # x: (batch, num_steps, C, H, W); fc1: in_sz = C*H*W -> N
    B, T, C, H, W = 2, 8, 1, 16, 16
    in_sz = C * H * W   # 256
    N = 32
    alpha, beta, th = 0.9, 0.8, 1.0

    key = jax.random.PRNGKey(0)
    kx, kw1, kb1, kw2, kb2 = jax.random.split(key, 5)

    x = jax.random.normal(kx, (B, T, C, H, W), jnp.float32)
    # Deterministic synthetic parameters (module __init__ shapes):
    Win = 0.1 * jax.random.normal(kw1, (N, in_sz), jnp.float32)   # fc1.weight
    b1 = 0.01 * jax.random.normal(kb1, (N,), jnp.float32)         # fc1.bias
    Wlsm = 0.1 * jax.random.normal(kw2, (N, N), jnp.float32)      # lsm.recurrent.weight
    brec = 0.01 * jax.random.normal(kb2, (N,), jnp.float32)       # lsm.recurrent.bias

    spk_rec = lsm_forward(x, Win, b1, Wlsm, brec, alpha, beta, th)
    spk_rec = jax.block_until_ready(spk_rec)

    ref = lsm_reference(x, Win, b1, Wlsm, brec, alpha, beta, th)
    assert spk_rec.shape == (T, B, N)
    assert jnp.allclose(spk_rec, ref, atol=1e-5), "mismatch vs reference"

    print("KERNEL_OK")
</pallas_src>

<mosaic_0001>
module attributes {stable_mosaic.version = 11 : i64} {
  func.func @lsm_recurrent_kernel(%arg0: i32, %arg1: memref<8x2x128xf32, #tpu.memory_space<vmem>>, %arg2: memref<128x128xf32, #tpu.memory_space<any>>, %arg3: memref<16x128xf32, #tpu.memory_space<vmem>>, %arg4: memref<128x128xf32, #tpu.memory_space<vmem>>, %arg5: memref<!tpu.dma_semaphore, #tpu.memory_space<semaphore_mem>>, %arg6: memref<2x128xf32, #tpu.memory_space<vmem>>, %arg7: memref<2x128xf32, #tpu.memory_space<vmem>>, %arg8: memref<2x128xf32, #tpu.memory_space<vmem>>) attributes {dimension_semantics = [#tpu.dimension_semantics<arbitrary>], iteration_bounds = array<i64: 1>, scalar_prefetch = 0 : i64, scratch_operands = 5 : i64, tpu.core_type = #tpu.core_type<tc>, window_params = [{transform_indices = @transform_0, window_bounds = array<i64: 8, 2, 128>}, {}, {transform_indices = @transform_2, window_bounds = array<i64: 16, 128>}]} {
    %c0_i32 = arith.constant 0 : i32
    %0 = arith.cmpi eq, %arg0, %c0_i32 : i32
    %1 = arith.extui %0 : i1 to i32
    %c0_i32_0 = arith.constant 0 : i32
    %2 = arith.cmpi ne, %1, %c0_i32_0 : i32
    scf.if %2 {
      tpu.enqueue_dma source(%arg2 : memref<128x128xf32, #tpu.memory_space<any>>) target(%arg4 : memref<128x128xf32, #tpu.memory_space<vmem>>) target_semaphore(%arg5 : memref<!tpu.dma_semaphore, #tpu.memory_space<semaphore_mem>>)
      tpu.wait_dma2 semaphore(%arg5 : memref<!tpu.dma_semaphore, #tpu.memory_space<semaphore_mem>>) src(%arg2 : memref<128x128xf32, #tpu.memory_space<any>>) dst(%arg4 : memref<128x128xf32, #tpu.memory_space<vmem>>)
      %cst_72 = arith.constant 0.000000e+00 : f32
      %148 = vector.broadcast %cst_72 : f32 to vector<2x128xf32>
      %c0_73 = arith.constant 0 : index
      %c0_74 = arith.constant 0 : index
      %149 = vector.load %arg6[%c0_73, %c0_74] : memref<2x128xf32, #tpu.memory_space<vmem>>, vector<2x128xf32>
      tpu.vector_store %arg6[%c0_73, %c0_74], %148 {strides = array<i32>} : memref<2x128xf32, #tpu.memory_space<vmem>>, vector<2x128xf32>,
      %cst_75 = arith.constant 0.000000e+00 : f32
      %150 = vector.broadcast %cst_75 : f32 to vector<2x128xf32>
      %c0_76 = arith.constant 0 : index
      %c0_77 = arith.constant 0 : index
      %151 = vector.load %arg7[%c0_76, %c0_77] : memref<2x128xf32, #tpu.memory_space<vmem>>, vector<2x128xf32>
      tpu.vector_store %arg7[%c0_76, %c0_77], %150 {strides = array<i32>} : memref<2x128xf32, #tpu.memory_space<vmem>>, vector<2x128xf32>,
      %cst_78 = arith.constant 0.000000e+00 : f32
      %152 = vector.broadcast %cst_78 : f32 to vector<2x128xf32>
      %c0_79 = arith.constant 0 : index
      %c0_80 = arith.constant 0 : index
      %153 = vector.load %arg8[%c0_79, %c0_80] : memref<2x128xf32, #tpu.memory_space<vmem>>, vector<2x128xf32>
      tpu.vector_store %arg8[%c0_79, %c0_80], %152 {strides = array<i32>} : memref<2x128xf32, #tpu.memory_space<vmem>>, vector<2x128xf32>,
    } else {
    }
    %c0 = arith.constant 0 : index
    %c0_1 = arith.constant 0 : index
    %3 = vector.load %arg6[%c0, %c0_1] : memref<2x128xf32, #tpu.memory_space<vmem>>, vector<2x128xf32>
    %c0_2 = arith.constant 0 : index
    %c0_3 = arith.constant 0 : index
    %4 = vector.load %arg7[%c0_2, %c0_3] : memref<2x128xf32, #tpu.memory_space<vmem>>, vector<2x128xf32>
    %c0_4 = arith.constant 0 : index
    %c0_5 = arith.constant 0 : index
    %5 = vector.load %arg8[%c0_4, %c0_5] : memref<2x128xf32, #tpu.memory_space<vmem>>, vector<2x128xf32>
    %c0_6 = arith.constant 0 : index
    %c0_7 = arith.constant 0 : index
    %6 = vector.load %arg4[%c0_6, %c0_7] : memref<128x128xf32, #tpu.memory_space<vmem>>, vector<128x128xf32>
    %cst = arith.constant dense<0.000000e+00> : vector<2x128xf32>
    %7 = tpu.matmul %3, %6, %cst {dimension_numbers = #tpu.dot_dimension_numbers<[1], [0], [0], [1], [0, 0, 1, 1], [], []>} : vector<2x128xf32>, vector<128x128xf32>, vector<2x128xf32> -> vector<2x128xf32>
    %cst_8 = arith.constant 0.899999976 : f32
    %8 = vector.broadcast %cst_8 : f32 to vector<2x128xf32>
    %9 = arith.mulf %8, %4 : vector<2x128xf32>
    %c0_9 = arith.constant 0 : index
    %c0_10 = arith.constant 0 : index
    %c0_11 = arith.constant 0 : index
    %10 = vector.load %arg1[%c0_9, %c0_10, %c0_11] : memref<8x2x128xf32, #tpu.memory_space<vmem>>, vector<1x2x128xf32>
    %11 = vector.shape_cast %10 : vector<1x2x128xf32> to vector<2x128xf32>
    %12 = arith.addf %9, %11 : vector<2x128xf32>
    %13 = arith.addf %12, %7 : vector<2x128xf32>
    %cst_12 = arith.constant 8.000000e-01 : f32
    %14 = vector.broadcast %cst_12 : f32 to vector<2x128xf32>
    %15 = arith.mulf %14, %5 : vector<2x128xf32>
    %16 = arith.addf %15, %13 : vector<2x128xf32>
    %cst_13 = arith.constant 1.000000e+00 : f32
    %17 = vector.broadcast %cst_13 : f32 to vector<2x128xf32>
    %18 = arith.mulf %3, %17 : vector<2x128xf32>
    %19 = arith.subf %16, %18 : vector<2x128xf32>
    %cst_14 = arith.constant 1.000000e+00 : f32
    %20 = vector.broadcast %cst_14 : f32 to vector<2x128xf32>
    %21 = arith.cmpf ogt, %19, %20 : vector<2x128xf32>
    %22 = arith.extui %21 : vector<2x128xi1> to vector<2x128xi32>
    %23 = arith.sitofp %22 : vector<2x128xi32> to vector<2x128xf32>
    %cst_15 = arith.constant dense<0.000000e+00> : vector<2x128xf32>
    %24 = tpu.matmul %23, %6, %cst_15 {dimension_numbers = #tpu.dot_dimension_numbers<[1], [0], [0], [1], [0, 0, 1, 1], [], []>} : vector<2x128xf32>, vector<128x128xf32>, vector<2x128xf32> -> vector<2x128xf32>
    %cst_16 = arith.constant 0.899999976 : f32
    %25 = vector.broadcast %cst_16 : f32 to vector<2x128xf32>
    %26 = arith.mulf %25, %13 : vector<2x128xf32>
    %c1 = arith.constant 1 : index
    %c0_17 = arith.constant 0 : index
    %c0_18 = arith.constant 0 : index
    %27 = vector.load %arg1[%c1, %c0_17, %c0_18] : memref<8x2x128xf32, #tpu.memory_space<vmem>>, vector<1x2x128xf32>
    %28 = vector.shape_cast %27 : vector<1x2x128xf32> to vector<2x128xf32>
    %29 = arith.addf %26, %28 : vector<2x128xf32>
    %30 = arith.addf %29, %24 : vector<2x128xf32>
    %cst_19 = arith.constant 8.000000e-01 : f32
    %31 = vector.broadcast %cst_19 : f32 to vector<2x128xf32>
    %32 = arith.mulf %31, %19 : vector<2x128xf32>
    %33 = arith.addf %32, %30 : vector<2x128xf32>
    %cst_20 = arith.constant 1.000000e+00 : f32
    %34 = vector.broadcast %cst_20 : f32 to vector<2x128xf32>
    %35 = arith.mulf %23, %34 : vector<2x128xf32>
    %36 = arith.subf %33, %35 : vector<2x128xf32>
    %cst_21 = arith.constant 1.000000e+00 : f32
    %37 = vector.broadcast %cst_21 : f32 to vector<2x128xf32>
    %38 = arith.cmpf ogt, %36, %37 : vector<2x128xf32>
    %39 = arith.extui %38 : vector<2x128xi1> to vector<2x128xi32>
    %40 = arith.sitofp %39 : vector<2x128xi32> to vector<2x128xf32>
    %cst_22 = arith.constant dense<0.000000e+00> : vector<2x128xf32>
    %41 = tpu.matmul %40, %6, %cst_22 {dimension_numbers = #tpu.dot_dimension_numbers<[1], [0], [0], [1], [0, 0, 1, 1], [], []>} : vector<2x128xf32>, vector<128x128xf32>, vector<2x128xf32> -> vector<2x128xf32>
    %cst_23 = arith.constant 0.899999976 : f32
    %42 = vector.broadcast %cst_23 : f32 to vector<2x128xf32>
    %43 = arith.mulf %42, %30 : vector<2x128xf32>
    %c2 = arith.constant 2 : index
    %c0_24 = arith.constant 0 : index
    %c0_25 = arith.constant 0 : index
    %44 = vector.load %arg1[%c2, %c0_24, %c0_25] : memref<8x2x128xf32, #tpu.memory_space<vmem>>, vector<1x2x128xf32>
    %45 = vector.shape_cast %44 : vector<1x2x128xf32> to vector<2x128xf32>
    %46 = arith.addf %43, %45 : vector<2x128xf32>
    %47 = arith.addf %46, %41 : vector<2x128xf32>
    %cst_26 = arith.constant 8.000000e-01 : f32
    %48 = vector.broadcast %cst_26 : f32 to vector<2x128xf32>
    %49 = arith.mulf %48, %36 : vector<2x128xf32>
    %50 = arith.addf %49, %47 : vector<2x128xf32>
    %cst_27 = arith.constant 1.000000e+00 : f32
    %51 = vector.broadcast %cst_27 : f32 to vector<2x128xf32>
    %52 = arith.mulf %40, %51 : vector<2x128xf32>
    %53 = arith.subf %50, %52 : vector<2x128xf32>
    %cst_28 = arith.constant 1.000000e+00 : f32
    %54 = vector.broadcast %cst_28 : f32 to vector<2x128xf32>
    %55 = arith.cmpf ogt, %53, %54 : vector<2x128xf32>
    %56 = arith.extui %55 : vector<2x128xi1> to vector<2x128xi32>
    %57 = arith.sitofp %56 : vector<2x128xi32> to vector<2x128xf32>
    %cst_29 = arith.constant dense<0.000000e+00> : vector<2x128xf32>
    %58 = tpu.matmul %57, %6, %cst_29 {dimension_numbers = #tpu.dot_dimension_numbers<[1], [0], [0], [1], [0, 0, 1, 1], [], []>} : vector<2x128xf32>, vector<128x128xf32>, vector<2x128xf32> -> vector<2x128xf32>
    %cst_30 = arith.constant 0.899999976 : f32
    %59 = vector.broadcast %cst_30 : f32 to vector<2x128xf32>
    %60 = arith.mulf %59, %47 : vector<2x128xf32>
    %c3 = arith.constant 3 : index
    %c0_31 = arith.constant 0 : index
    %c0_32 = arith.constant 0 : index
    %61 = vector.load %arg1[%c3, %c0_31, %c0_32] : memref<8x2x128xf32, #tpu.memory_space<vmem>>, vector<1x2x128xf32>
    %62 = vector.shape_cast %61 : vector<1x2x128xf32> to vector<2x128xf32>
    %63 = arith.addf %60, %62 : vector<2x128xf32>
    %64 = arith.addf %63, %58 : vector<2x128xf32>
    %cst_33 = arith.constant 8.000000e-01 : f32
    %65 = vector.broadcast %cst_33 : f32 to vector<2x128xf32>
    %66 = arith.mulf %65, %53 : vector<2x128xf32>
    %67 = arith.addf %66, %64 : vector<2x128xf32>
    %cst_34 = arith.constant 1.000000e+00 : f32
    %68 = vector.broadcast %cst_34 : f32 to vector<2x128xf32>
    %69 = arith.mulf %57, %68 : vector<2x128xf32>
    %70 = arith.subf %67, %69 : vector<2x128xf32>
    %cst_35 = arith.constant 1.000000e+00 : f32
    %71 = vector.broadcast %cst_35 : f32 to vector<2x128xf32>
    %72 = arith.cmpf ogt, %70, %71 : vector<2x128xf32>
    %73 = arith.extui %72 : vector<2x128xi1> to vector<2x128xi32>
    %74 = arith.sitofp %73 : vector<2x128xi32> to vector<2x128xf32>
    %cst_36 = arith.constant dense<0.000000e+00> : vector<2x128xf32>
    %75 = tpu.matmul %74, %6, %cst_36 {dimension_numbers = #tpu.dot_dimension_numbers<[1], [0], [0], [1], [0, 0, 1, 1], [], []>} : vector<2x128xf32>, vector<128x128xf32>, vector<2x128xf32> -> vector<2x128xf32>
    %cst_37 = arith.constant 0.899999976 : f32
    %76 = vector.broadcast %cst_37 : f32 to vector<2x128xf32>
    %77 = arith.mulf %76, %64 : vector<2x128xf32>
    %c4 = arith.constant 4 : index
    %c0_38 = arith.constant 0 : index
    %c0_39 = arith.constant 0 : index
    %78 = vector.load %arg1[%c4, %c0_38, %c0_39] : memref<8x2x128xf32, #tpu.memory_space<vmem>>, vector<1x2x128xf32>
    %79 = vector.shape_cast %78 : vector<1x2x128xf32> to vector<2x128xf32>
    %80 = arith.addf %77, %79 : vector<2x128xf32>
    %81 = arith.addf %80, %75 : vector<2x128xf32>
    %cst_40 = arith.constant 8.000000e-01 : f32
    %82 = vector.broadcast %cst_40 : f32 to vector<2x128xf32>
    %83 = arith.mulf %82, %70 : vector<2x128xf32>
    %84 = arith.addf %83, %81 : vector<2x128xf32>
    %cst_41 = arith.constant 1.000000e+00 : f32
    %85 = vector.broadcast %cst_41 : f32 to vector<2x128xf32>
    %86 = arith.mulf %74, %85 : vector<2x128xf32>
    %87 = arith.subf %84, %86 : vector<2x128xf32>
    %cst_42 = arith.constant 1.000000e+00 : f32
    %88 = vector.broadcast %cst_42 : f32 to vector<2x128xf32>
    %89 = arith.cmpf ogt, %87, %88 : vector<2x128xf32>
    %90 = arith.extui %89 : vector<2x128xi1> to vector<2x128xi32>
    %91 = arith.sitofp %90 : vector<2x128xi32> to vector<2x128xf32>
    %cst_43 = arith.constant dense<0.000000e+00> : vector<2x128xf32>
    %92 = tpu.matmul %91, %6, %cst_43 {dimension_numbers = #tpu.dot_dimension_numbers<[1], [0], [0], [1], [0, 0, 1, 1], [], []>} : vector<2x128xf32>, vector<128x128xf32>, vector<2x128xf32> -> vector<2x128xf32>
    %cst_44 = arith.constant 0.899999976 : f32
    %93 = vector.broadcast %cst_44 : f32 to vector<2x128xf32>
    %94 = arith.mulf %93, %81 : vector<2x128xf32>
    %c5 = arith.constant 5 : index
    %c0_45 = arith.constant 0 : index
    %c0_46 = arith.constant 0 : index
    %95 = vector.load %arg1[%c5, %c0_45, %c0_46] : memref<8x2x128xf32, #tpu.memory_space<vmem>>, vector<1x2x128xf32>
    %96 = vector.shape_cast %95 : vector<1x2x128xf32> to vector<2x128xf32>
    %97 = arith.addf %94, %96 : vector<2x128xf32>
    %98 = arith.addf %97, %92 : vector<2x128xf32>
    %cst_47 = arith.constant 8.000000e-01 : f32
    %99 = vector.broadcast %cst_47 : f32 to vector<2x128xf32>
    %100 = arith.mulf %99, %87 : vector<2x128xf32>
    %101 = arith.addf %100, %98 : vector<2x128xf32>
    %cst_48 = arith.constant 1.000000e+00 : f32
    %102 = vector.broadcast %cst_48 : f32 to vector<2x128xf32>
    %103 = arith.mulf %91, %102 : vector<2x128xf32>
    %104 = arith.subf %101, %103 : vector<2x128xf32>
    %cst_49 = arith.constant 1.000000e+00 : f32
    %105 = vector.broadcast %cst_49 : f32 to vector<2x128xf32>
    %106 = arith.cmpf ogt, %104, %105 : vector<2x128xf32>
    %107 = arith.extui %106 : vector<2x128xi1> to vector<2x128xi32>
    %108 = arith.sitofp %107 : vector<2x128xi32> to vector<2x128xf32>
    %cst_50 = arith.constant dense<0.000000e+00> : vector<2x128xf32>
    %109 = tpu.matmul %108, %6, %cst_50 {dimension_numbers = #tpu.dot_dimension_numbers<[1], [0], [0], [1], [0, 0, 1, 1], [], []>} : vector<2x128xf32>, vector<128x128xf32>, vector<2x128xf32> -> vector<2x128xf32>
    %cst_51 = arith.constant 0.899999976 : f32
    %110 = vector.broadcast %cst_51 : f32 to vector<2x128xf32>
    %111 = arith.mulf %110, %98 : vector<2x128xf32>
    %c6 = arith.constant 6 : index
    %c0_52 = arith.constant 0 : index
    %c0_53 = arith.constant 0 : index
    %112 = vector.load %arg1[%c6, %c0_52, %c0_53] : memref<8x2x128xf32, #tpu.memory_space<vmem>>, vector<1x2x128xf32>
    %113 = vector.shape_cast %112 : vector<1x2x128xf32> to vector<2x128xf32>
    %114 = arith.addf %111, %113 : vector<2x128xf32>
    %115 = arith.addf %114, %109 : vector<2x128xf32>
    %cst_54 = arith.constant 8.000000e-01 : f32
    %116 = vector.broadcast %cst_54 : f32 to vector<2x128xf32>
    %117 = arith.mulf %116, %104 : vector<2x128xf32>
    %118 = arith.addf %117, %115 : vector<2x128xf32>
    %cst_55 = arith.constant 1.000000e+00 : f32
    %119 = vector.broadcast %cst_55 : f32 to vector<2x128xf32>
    %120 = arith.mulf %108, %119 : vector<2x128xf32>
    %121 = arith.subf %118, %120 : vector<2x128xf32>
    %cst_56 = arith.constant 1.000000e+00 : f32
    %122 = vector.broadcast %cst_56 : f32 to vector<2x128xf32>
    %123 = arith.cmpf ogt, %121, %122 : vector<2x128xf32>
    %124 = arith.extui %123 : vector<2x128xi1> to vector<2x128xi32>
    %125 = arith.sitofp %124 : vector<2x128xi32> to vector<2x128xf32>
    %cst_57 = arith.constant dense<0.000000e+00> : vector<2x128xf32>
    %126 = tpu.matmul %125, %6, %cst_57 {dimension_numbers = #tpu.dot_dimension_numbers<[1], [0], [0], [1], [0, 0, 1, 1], [], []>} : vector<2x128xf32>, vector<128x128xf32>, vector<2x128xf32> -> vector<2x128xf32>
    %cst_58 = arith.constant 0.899999976 : f32
    %127 = vector.broadcast %cst_58 : f32 to vector<2x128xf32>
    %128 = arith.mulf %127, %115 : vector<2x128xf32>
    %c7 = arith.constant 7 : index
    %c0_59 = arith.constant 0 : index
    %c0_60 = arith.constant 0 : index
    %129 = vector.load %arg1[%c7, %c0_59, %c0_60] : memref<8x2x128xf32, #tpu.memory_space<vmem>>, vector<1x2x128xf32>
    %130 = vector.shape_cast %129 : vector<1x2x128xf32> to vector<2x128xf32>
    %131 = arith.addf %128, %130 : vector<2x128xf32>
    %132 = arith.addf %131, %126 : vector<2x128xf32>
    %cst_61 = arith.constant 8.000000e-01 : f32
    %133 = vector.broadcast %cst_61 : f32 to vector<2x128xf32>
    %134 = arith.mulf %133, %121 : vector<2x128xf32>
    %135 = arith.addf %134, %132 : vector<2x128xf32>
    %cst_62 = arith.constant 1.000000e+00 : f32
    %136 = vector.broadcast %cst_62 : f32 to vector<2x128xf32>
    %137 = arith.mulf %125, %136 : vector<2x128xf32>
    %138 = arith.subf %135, %137 : vector<2x128xf32>
    %cst_63 = arith.constant 1.000000e+00 : f32
    %139 = vector.broadcast %cst_63 : f32 to vector<2x128xf32>
    %140 = arith.cmpf ogt, %138, %139 : vector<2x128xf32>
    %141 = arith.extui %140 : vector<2x128xi1> to vector<2x128xi32>
    %142 = arith.sitofp %141 : vector<2x128xi32> to vector<2x128xf32>
    %143 = tpu.concatenate %23, %40, %57, %74, %91, %108, %125, %142 in 0 : vector<2x128xf32>, vector<2x128xf32>, vector<2x128xf32>, vector<2x128xf32>, vector<2x128xf32>, vector<2x128xf32>, vector<2x128xf32>, vector<2x128xf32> -> vector<16x128xf32>
    %c0_64 = arith.constant 0 : index
    %c0_65 = arith.constant 0 : index
    %144 = vector.load %arg3[%c0_64, %c0_65] : memref<16x128xf32, #tpu.memory_space<vmem>>, vector<16x128xf32>
    tpu.vector_store %arg3[%c0_64, %c0_65], %143 {strides = array<i32>} : memref<16x128xf32, #tpu.memory_space<vmem>>, vector<16x128xf32>,
    %c0_66 = arith.constant 0 : index
    %c0_67 = arith.constant 0 : index
    %145 = vector.load %arg6[%c0_66, %c0_67] : memref<2x128xf32, #tpu.memory_space<vmem>>, vector<2x128xf32>
    tpu.vector_store %arg6[%c0_66, %c0_67], %142 {strides = array<i32>} : memref<2x128xf32, #tpu.memory_space<vmem>>, vector<2x128xf32>,
    %c0_68 = arith.constant 0 : index
    %c0_69 = arith.constant 0 : index
    %146 = vector.load %arg7[%c0_68, %c0_69] : memref<2x128xf32, #tpu.memory_space<vmem>>, vector<2x128xf32>
    tpu.vector_store %arg7[%c0_68, %c0_69], %132 {strides = array<i32>} : memref<2x128xf32, #tpu.memory_space<vmem>>, vector<2x128xf32>,
    %c0_70 = arith.constant 0 : index
    %c0_71 = arith.constant 0 : index
    %147 = vector.load %arg8[%c0_70, %c0_71] : memref<2x128xf32, #tpu.memory_space<vmem>>, vector<2x128xf32>
    tpu.vector_store %arg8[%c0_70, %c0_71], %138 {strides = array<i32>} : memref<2x128xf32, #tpu.memory_space<vmem>>, vector<2x128xf32>,
    return
  }
  func.func @transform_0(%arg0: i32) -> (i32, i32, i32) {
    %c0_i32 = arith.constant 0 : i32
    %c0_i32_0 = arith.constant 0 : i32
    %c0_i32_1 = arith.constant 0 : i32
    return %arg0, %c0_i32, %c0_i32_0 : i32, i32, i32
  }
  func.func @transform_2(%arg0: i32) -> (i32, i32) {
    %c0_i32 = arith.constant 0 : i32
    %c0_i32_0 = arith.constant 0 : i32
    return %arg0, %c0_i32 : i32, i32
  }
}

</mosaic_0001>

<llo_original>
// kernel: tpu_custom_call.1
$region0: #{tpu_custom_call.1}
  #allocation0 [shape = 'u32[]', space=smem, size = 0x4, offset = 0x4, fixed_abs, tag = 'smem constant byte address 0x4 - core index']
  #allocation1 [shape = 'u32[72,128]{1,0:T(1,128)}', space=vmem, size = 0x9000, scoped, tag = 'internal scratch']
  #allocation2 [shape = 'f32[128,128]{1,0:T(8,128)}', space=vmem, size = 0x10000, scoped, tag = 'scratch operand']
  #allocation3 [shape = 's32[1]{0}', space=sflag, size = 0x4, scoped, tag = 'scratch operand']
  #allocation4 [shape = 'f32[2,128]{1,0:T(2,128)}', space=vmem, size = 0x400, scoped, tag = 'scratch operand']
  #allocation5 [shape = 'f32[2,128]{1,0:T(2,128)}', space=vmem, size = 0x400, scoped, tag = 'scratch operand']
  #allocation6 [shape = 'f32[2,128]{1,0:T(2,128)}', space=vmem, size = 0x400, scoped, tag = 'scratch operand']
  #allocation11 [shape = 's32[]', space=sflag, size = 0x4, offset = 0, fixed_abs, tag = 'sflag constant byte address 0x0 - dummy sync flag']
  #allocation12 [shape = 's32[]', space=sflag, size = 0x4, offset = 0, fixed_abs, tag = 'sflag constant byte address 0x0 - dummy sync flag']
  #allocation13 [shape = 'u32[]', space=smem, size = 0x4, offset = 0x44, fixed_abs, tag = 'smem constant byte address 0x44 - assertion arg 0']
  #allocation14 [shape = 'u32[]', space=smem, size = 0x4, offset = 0x48, fixed_abs, tag = 'smem constant byte address 0x48 - assertion arg 1']
  %s0 = inlined_call_operand.hbm [shape: f32[8,2,128], index: 0, kind: input, shape index: {}]
  %s1 = inlined_call_operand.hbm [shape: f32[128,128], index: 1, kind: input, shape index: {}]
  %s2 = inlined_call_operand.hbm [shape: f32[16,128], index: 2, kind: output, shape index: {}]
  %s3 = sld [smem:[#allocation0]]
  $region26: #{tpu_custom_call.1} parent=0
    _
  %s5 = ssub.s32 1, %s3
  %s6 = scalar_select 0, %s5, %s3
  $region1: #{tpu_custom_call.1} parent=0
    #allocation7 [shape = 'u8[8192]{0}', space=vmem, size = 0x2000, scoped, tag = 'input window, operand 0, single buffered']
    #allocation8 [shape = 's32[1]{0}', space=sflag, size = 0x4, scoped, tag = 'scoped memory for tpu_custom_call.1']
    #allocation9 [shape = 's32[1]{0}', space=sflag, size = 0x4, scoped, tag = 'scoped memory for tpu_custom_call.1']
    #allocation10 [shape = 'u8[8192]{0}', space=vmem, size = 0x2000, scoped, tag = 'output window, operand 0, single buffered']
    %7 = vsyncpa [#allocation8], 0
    %8 = vsyncpa [#allocation9], 0
    // Predicated region
    $region2: #{tpu_custom_call.1} parent=1 // pred_check
      _
    $region3: #{tpu_custom_call.1} parent=1 // pred_check_branch
      %10 = sbr.rel (0) target = $region5
    $region4: #{tpu_custom_call.1} parent=1 // pred_region
      %12 = vsyncadd [#allocation8], 0
      %s13 = sshll.u32 %s0, 4
      %s14 = int_to_ptr.hbm [resolvable:$true] %s13
      %s15 = sshll.u32 [#allocation7], 4
      %s16 = int_to_ptr.vmem [resolvable:$true] %s15
      %21 = dma.hbm_to_vmem [thread:$0]  %s14, 256, %s16, [#allocation8], 32, 32, 2
    $region5: #{tpu_custom_call.1} parent=1 // pred_fallthru
      _
    // Predicated region
    $region6: #{tpu_custom_call.1} parent=1 // pred_check
      _
    $region7: #{tpu_custom_call.1} parent=1 // pred_check_branch
      %23 = sbr.rel (0) target = $region9
    $region8: #{tpu_custom_call.1} parent=1 // pred_region
      %25 = dma.done [#allocation8], 256
    $region9: #{tpu_custom_call.1} parent=1 // pred_fallthru
      _
    %p26 = scmp.eq.s32.totalorder 0, 0
    // Predicated region
    $region10: #{tpu_custom_call.1} parent=1 // pred_check
      %p27 = pneg %p26
    $region11: #{tpu_custom_call.1} parent=1 // pred_check_branch
      %29 = sbr.rel (%p27) target = $region13
    $region12: #{tpu_custom_call.1} parent=1 // pred_region
      // Predicated region
      $region14: #{tpu_custom_call.1} parent=12 // pred_check
        _
      $region15: #{tpu_custom_call.1} parent=12 // pred_check_branch
        %31 = sbr.rel target = $region17
      $region16: #{tpu_custom_call.1} parent=12 // pred_region
        %32 = sst [smem:[#allocation13]] [#allocation12]
        %33 = sst [smem:[#allocation14]] [#allocation11]
      $region17: #{tpu_custom_call.1} parent=12 // pred_fallthru
        _
      %35 = shalt.err (0)
      %s37 = sshll.u32 %s1, 4
      %s38 = int_to_ptr.hbm [resolvable:$true] %s37
      %s39 = sshll.u32 [#allocation2], 4
      %s40 = int_to_ptr.vmem [resolvable:$true] %s39
      %42 = dma.hbm_to_vmem [thread:$0]  %s38, 2048, %s40, [#allocation3]
      %s43 = smul.u32 128, 1
      %s44 = sshll.u32 %s43, 4
      %45 = dma.done [#allocation3], %s44
      %46 = vst [vmem:[#allocation4] sm:$0x3] 0.0
      %47 = vst [vmem:[#allocation5] sm:$0x3] 0.0
      %48 = vst [vmem:[#allocation6] sm:$0x3] 0.0
    $region13: #{tpu_custom_call.1} parent=1 // pred_fallthru
      _
    %v49 = vld [vmem:[#allocation4] sm:$0x3]
    %v50 = vld [vmem:[#allocation5] sm:$0x3]
    %v51 = vld [vmem:[#allocation6] sm:$0x3]
    %v52 = vld [vmem:[#allocation2] sm:$0xff]
    %v53 = vld [vmem:[#allocation2 + $0x8] sm:$0xff]
    %v54 = vld [vmem:[#allocation2 + $0x10] sm:$0xff]
    %v55 = vld [vmem:[#allocation2 + $0x18] sm:$0xff]
    %v56 = vld [vmem:[#allocation2 + $0x20] sm:$0xff]
    %v57 = vld [vmem:[#allocation2 + $0x28] sm:$0xff]
    %v58 = vld [vmem:[#allocation2 + $0x30] sm:$0xff]
    %v59 = vld [vmem:[#allocation2 + $0x38] sm:$0xff]
    %v60 = vld [vmem:[#allocation2 + $0x40] sm:$0xff]
    %v61 = vld [vmem:[#allocation2 + $0x48] sm:$0xff]
    %v62 = vld [vmem:[#allocation2 + $0x50] sm:$0xff]
    %v63 = vld [vmem:[#allocation2 + $0x58] sm:$0xff]
    %v64 = vld [vmem:[#allocation2 + $0x60] sm:$0xff]
    %v65 = vld [vmem:[#allocation2 + $0x68] sm:$0xff]
    %v66 = vld [vmem:[#allocation2 + $0x70] sm:$0xff]
    %v67 = vld [vmem:[#allocation2 + $0x78] sm:$0xff]
    %68 = vmatpush.msra.mxu0 %v67
    %69 = vmatpush.msra.mxu0 %v66
    %70 = vmatpush.msra.mxu0 %v65
    %71 = vmatpush.msra.mxu0 %v64
    %72 = vmatpush.msra.mxu0 %v63
    %73 = vmatpush.msra.mxu0 %v62
    %74 = vmatpush.msra.mxu0 %v61
    %75 = vmatpush.msra.mxu0 %v60
    %76 = vmatpush.msra.mxu0 %v59
    %77 = vmatpush.msra.mxu0 %v58
    %78 = vmatpush.msra.mxu0 %v57
    %79 = vmatpush.msra.mxu0 %v56
    %80 = vmatpush.msra.mxu0 %v55
    %81 = vmatpush.msra.mxu0 %v54
    %82 = vmatpush.msra.mxu0 %v53
    %83 = vmatpush.msra.mxu0 %v52
    %84 = vmatmul.f32.gmra.mxu0 %v49
    %v85 = vpop.f32.mrf.mxu0
    %v86 = vadd.f32 0.0, %v85
    %87 = vdwg.mxu0
    %v88 = vmul.f32 %v50, 0.9
    %v89 = vld [vmem:[#allocation7] sm:$0x3]
    %v90 = vadd.f32 %v88, %v89
    %v91 = vadd.f32 %v90, %v86
    %v92 = vmul.f32 %v51, 0.8
    %v93 = vadd.f32 %v92, %v91
    %v94 = vsub.f32 %v93, %v49
    %vm95 = vcmp.gt.f32.partialorder %v94, 1.0
    %v96 = vsel %vm95, 1, 0
    %v97 = vcvt.s32.f32 %v96
    %98 = vmatpush.msra.mxu0 %v67
    %99 = vmatpush.msra.mxu0 %v66
    %100 = vmatpush.msra.mxu0 %v65
    %101 = vmatpush.msra.mxu0 %v64
    %102 = vmatpush.msra.mxu0 %v63
    %103 = vmatpush.msra.mxu0 %v62
    %104 = vmatpush.msra.mxu0 %v61
    %105 = vmatpush.msra.mxu0 %v60
    %106 = vmatpush.msra.mxu0 %v59
    %107 = vmatpush.msra.mxu0 %v58
    %108 = vmatpush.msra.mxu0 %v57
    %109 = vmatpush.msra.mxu0 %v56
    %110 = vmatpush.msra.mxu0 %v55
    %111 = vmatpush.msra.mxu0 %v54
    %112 = vmatpush.msra.mxu0 %v53
    %113 = vmatpush.msra.mxu0 %v52
    %114 = vmatmul.f32.gmra.mxu0 %v97
    %v115 = vpop.f32.mrf.mxu0
    %v116 = vadd.f32 0.0, %v115
    %117 = vdwg.mxu0
    %v118 = vmul.f32 %v91, 0.9
    %s119 = scalar_lea.vmem [#allocation7], 2
    %v120 = vld [vmem:[%s119] sm:$0x3]
    %v121 = vadd.f32 %v118, %v120
    %v122 = vadd.f32 %v121, %v116
    %v123 = vmul.f32 %v94, 0.8
    %v124 = vadd.f32 %v123, %v122
    %v125 = vsub.f32 %v124, %v97
    %vm126 = vcmp.gt.f32.partialorder %v125, 1.0
    %v127 = vsel %vm126, 1, 0
    %v128 = vcvt.s32.f32 %v127
    %129 = vmatpush.msra.mxu0 %v67
    %130 = vmatpush.msra.mxu0 %v66
    %131 = vmatpush.msra.mxu0 %v65
    %132 = vmatpush.msra.mxu0 %v64
    %133 = vmatpush.msra.mxu0 %v63
    %134 = vmatpush.msra.mxu0 %v62
    %135 = vmatpush.msra.mxu0 %v61
    %136 = vmatpush.msra.mxu0 %v60
    %137 = vmatpush.msra.mxu0 %v59
    %138 = vmatpush.msra.mxu0 %v58
    %139 = vmatpush.msra.mxu0 %v57
    %140 = vmatpush.msra.mxu0 %v56
    %141 = vmatpush.msra.mxu0 %v55
    %142 = vmatpush.msra.mxu0 %v54
    %143 = vmatpush.msra.mxu0 %v53
    %144 = vmatpush.msra.mxu0 %v52
    %145 = vmatmul.f32.gmra.mxu0 %v128
    %v146 = vpop.f32.mrf.mxu0
    %v147 = vadd.f32 0.0, %v146
    %148 = vdwg.mxu0
    %v149 = vmul.f32 %v122, 0.9
    %s150 = scalar_lea.vmem [#allocation7], 4
    %v151 = vld [vmem:[%s150] sm:$0x3]
    %v152 = vadd.f32 %v149, %v151
    %v153 = vadd.f32 %v152, %v147
    %v154 = vmul.f32 %v125, 0.8
    %v155 = vadd.f32 %v154, %v153
    %v156 = vsub.f32 %v155, %v128
    %vm157 = vcmp.gt.f32.partialorder %v156, 1.0
    %v158 = vsel %vm157, 1, 0
    %v159 = vcvt.s32.f32 %v158
    %160 = vmatpush.msra.mxu0 %v67
    %161 = vmatpush.msra.mxu0 %v66
    %162 = vmatpush.msra.mxu0 %v65
    %163 = vmatpush.msra.mxu0 %v64
    %164 = vmatpush.msra.mxu0 %v63
    %165 = vmatpush.msra.mxu0 %v62
    %166 = vmatpush.msra.mxu0 %v61
    %167 = vmatpush.msra.mxu0 %v60
    %168 = vmatpush.msra.mxu0 %v59
    %169 = vmatpush.msra.mxu0 %v58
    %170 = vmatpush.msra.mxu0 %v57
    %171 = vmatpush.msra.mxu0 %v56
    %172 = vmatpush.msra.mxu0 %v55
    %173 = vmatpush.msra.mxu0 %v54
    %174 = vmatpush.msra.mxu0 %v53
    %175 = vmatpush.msra.mxu0 %v52
    %176 = vmatmul.f32.gmra.mxu0 %v159
    %v177 = vpop.f32.mrf.mxu0
    %v178 = vadd.f32 0.0, %v177
    %179 = vdwg.mxu0
    %v180 = vmul.f32 %v153, 0.9
    %s181 = scalar_lea.vmem [#allocation7], 6
    %v182 = vld [vmem:[%s181] sm:$0x3]
    %v183 = vadd.f32 %v180, %v182
    %v184 = vadd.f32 %v183, %v178
    %v185 = vmul.f32 %v156, 0.8
    %v186 = vadd.f32 %v185, %v184
    %v187 = vsub.f32 %v186, %v159
    %vm188 = vcmp.gt.f32.partialorder %v187, 1.0
    %v189 = vsel %vm188, 1, 0
    %v190 = vcvt.s32.f32 %v189
    %191 = vmatpush.msra.mxu0 %v67
    %192 = vmatpush.msra.mxu0 %v66
    %193 = vmatpush.msra.mxu0 %v65
    %194 = vmatpush.msra.mxu0 %v64
    %195 = vmatpush.msra.mxu0 %v63
    %196 = vmatpush.msra.mxu0 %v62
    %197 = vmatpush.msra.mxu0 %v61
    %198 = vmatpush.msra.mxu0 %v60
    %199 = vmatpush.msra.mxu0 %v59
    %200 = vmatpush.msra.mxu0 %v58
    %201 = vmatpush.msra.mxu0 %v57
    %202 = vmatpush.msra.mxu0 %v56
    %203 = vmatpush.msra.mxu0 %v55
    %204 = vmatpush.msra.mxu0 %v54
    %205 = vmatpush.msra.mxu0 %v53
    %206 = vmatpush.msra.mxu0 %v52
    %207 = vmatmul.f32.gmra.mxu0 %v190
    %v208 = vpop.f32.mrf.mxu0
    %v209 = vadd.f32 0.0, %v208
    %210 = vdwg.mxu0
    %v211 = vmul.f32 %v184, 0.9
    %s212 = scalar_lea.vmem [#allocation7], 8
    %v213 = vld [vmem:[%s212] sm:$0x3]
    %v214 = vadd.f32 %v211, %v213
    %v215 = vadd.f32 %v214, %v209
    %v216 = vmul.f32 %v187, 0.8
    %v217 = vadd.f32 %v216, %v215
    %v218 = vsub.f32 %v217, %v190
    %vm219 = vcmp.gt.f32.partialorder %v218, 1.0
    %v220 = vsel %vm219, 1, 0
    %v221 = vcvt.s32.f32 %v220
    %222 = vmatpush.msra.mxu0 %v67
    %223 = vmatpush.msra.mxu0 %v66
    %224 = vmatpush.msra.mxu0 %v65
    %225 = vmatpush.msra.mxu0 %v64
    %226 = vmatpush.msra.mxu0 %v63
    %227 = vmatpush.msra.mxu0 %v62
    %228 = vmatpush.msra.mxu0 %v61
    %229 = vmatpush.msra.mxu0 %v60
    %230 = vmatpush.msra.mxu0 %v59
    %231 = vmatpush.msra.mxu0 %v58
    %232 = vmatpush.msra.mxu0 %v57
    %233 = vmatpush.msra.mxu0 %v56
    %234 = vmatpush.msra.mxu0 %v55
    %235 = vmatpush.msra.mxu0 %v54
    %236 = vmatpush.msra.mxu0 %v53
    %237 = vmatpush.msra.mxu0 %v52
    %238 = vmatmul.f32.gmra.mxu0 %v221
    %v239 = vpop.f32.mrf.mxu0
    %v240 = vadd.f32 0.0, %v239
    %241 = vdwg.mxu0
    %v242 = vmul.f32 %v215, 0.9
    %s243 = scalar_lea.vmem [#allocation7], 10
    %v244 = vld [vmem:[%s243] sm:$0x3]
    %v245 = vadd.f32 %v242, %v244
    %v246 = vadd.f32 %v245, %v240
    %v247 = vmul.f32 %v218, 0.8
    %v248 = vadd.f32 %v247, %v246
    %v249 = vsub.f32 %v248, %v221
    %vm250 = vcmp.gt.f32.partialorder %v249, 1.0
    %v251 = vsel %vm250, 1, 0
    %v252 = vcvt.s32.f32 %v251
    %253 = vmatpush.msra.mxu0 %v67
    %254 = vmatpush.msra.mxu0 %v66
    %255 = vmatpush.msra.mxu0 %v65
    %256 = vmatpush.msra.mxu0 %v64
    %257 = vmatpush.msra.mxu0 %v63
    %258 = vmatpush.msra.mxu0 %v62
    %259 = vmatpush.msra.mxu0 %v61
    %260 = vmatpush.msra.mxu0 %v60
    %261 = vmatpush.msra.mxu0 %v59
    %262 = vmatpush.msra.mxu0 %v58
    %263 = vmatpush.msra.mxu0 %v57
    %264 = vmatpush.msra.mxu0 %v56
    %265 = vmatpush.msra.mxu0 %v55
    %266 = vmatpush.msra.mxu0 %v54
    %267 = vmatpush.msra.mxu0 %v53
    %268 = vmatpush.msra.mxu0 %v52
    %269 = vmatmul.f32.gmra.mxu0 %v252
    %v270 = vpop.f32.mrf.mxu0
    %v271 = vadd.f32 0.0, %v270
    %272 = vdwg.mxu0
    %v273 = vmul.f32 %v246, 0.9
    %s274 = scalar_lea.vmem [#allocation7], 12
    %v275 = vld [vmem:[%s274] sm:$0x3]
    %v276 = vadd.f32 %v273, %v275
    %v277 = vadd.f32 %v276, %v271
    %v278 = vmul.f32 %v249, 0.8
    %v279 = vadd.f32 %v278, %v277
    %v280 = vsub.f32 %v279, %v252
    %vm281 = vcmp.gt.f32.partialorder %v280, 1.0
    %v282 = vsel %vm281, 1, 0
    %v283 = vcvt.s32.f32 %v282
    %284 = vmatpush.msra.mxu0 %v67
    %285 = vmatpush.msra.mxu0 %v66
    %286 = vmatpush.msra.mxu0 %v65
    %287 = vmatpush.msra.mxu0 %v64
    %288 = vmatpush.msra.mxu0 %v63
    %289 = vmatpush.msra.mxu0 %v62
    %290 = vmatpush.msra.mxu0 %v61
    %291 = vmatpush.msra.mxu0 %v60
    %292 = vmatpush.msra.mxu0 %v59
    %293 = vmatpush.msra.mxu0 %v58
    %294 = vmatpush.msra.mxu0 %v57
    %295 = vmatpush.msra.mxu0 %v56
    %296 = vmatpush.msra.mxu0 %v55
    %297 = vmatpush.msra.mxu0 %v54
    %298 = vmatpush.msra.mxu0 %v53
    %299 = vmatpush.msra.mxu0 %v52
    %300 = vmatmul.f32.gmra.mxu0 %v283
    %v301 = vpop.f32.mrf.mxu0
    %v302 = vadd.f32 0.0, %v301
    %303 = vdwg.mxu0
    %v304 = vmul.f32 %v277, 0.9
    %s305 = scalar_lea.vmem [#allocation7], 14
    %v306 = vld [vmem:[%s305] sm:$0x3]
    %v307 = vadd.f32 %v304, %v306
    %v308 = vadd.f32 %v307, %v302
    %v309 = vmul.f32 %v280, 0.8
    %v310 = vadd.f32 %v309, %v308
    %v311 = vsub.f32 %v310, %v283
    %vm312 = vcmp.gt.f32.partialorder %v311, 1.0
    %v313 = vsel %vm312, 1, 0
    %v314 = vcvt.s32.f32 %v313
    %v316 = vrot.slane %v128, 6
    %v319 = vrot.slane %v159, 4
    %v322 = vrot.slane %v190, 2
    %v325 = vrot.slane %v252, 6
    %v328 = vrot.slane %v283, 4
    %v331 = vrot.slane %v314, 2
    %vm333 = vcmask 1041408
    %v334 = vsel %vm333, %v97, %v316
    %vm335 = vcmask 1043456
    %v336 = vsel %vm335, %v334, %v319
    %vm337 = vcmask 1045504
    %v338 = vsel %vm337, %v336, %v322
    %v339 = vsel %vm333, %v221, %v325
    %v340 = vsel %vm335, %v339, %v328
    %v341 = vsel %vm337, %v340, %v331
    %342 = vst [vmem:[#allocation10] sm:$0xff] %v338
    %343 = vst [vmem:[#allocation10 + $0x8] sm:$0xff] %v341
    %344 = vst [vmem:[#allocation4] sm:$0x3] %v314
    %345 = vst [vmem:[#allocation5] sm:$0x3] %v308
    %346 = vst [vmem:[#allocation6] sm:$0x3] %v311
    // Predicated region
    $region18: #{tpu_custom_call.1} parent=1 // pred_check
      _
    $region19: #{tpu_custom_call.1} parent=1 // pred_check_branch
      %348 = sbr.rel (0) target = $region21
    $region20: #{tpu_custom_call.1} parent=1 // pred_region
      %350 = vsyncadd [#allocation9], 0
      %s351 = sshll.u32 [#allocation10], 4
      %s352 = int_to_ptr.vmem [resolvable:$true] %s351
      %s353 = sshll.u32 %s2, 4
      %s354 = int_to_ptr.hbm [resolvable:$true] %s353
      %359 = dma.vmem_to_hbm [thread:$0]  %s352, 256, %s354, [#allocation9], 128, 128, 8
    $region21: #{tpu_custom_call.1} parent=1 // pred_fallthru
      _
    // Predicated region
    $region22: #{tpu_custom_call.1} parent=1 // pred_check
      _
    $region23: #{tpu_custom_call.1} parent=1 // pred_check_branch
      %361 = sbr.rel (0) target = $region25
    $region24: #{tpu_custom_call.1} parent=1 // pred_region
      %363 = dma.done [#allocation9], 256
    $region25: #{tpu_custom_call.1} parent=1 // pred_fallthru
      _
    %364 = vsyncpa [#allocation8], 1
    %365 = vsyncpa [#allocation9], 1
  %366 = vsyncmov [#allocation3]
  %s367 = vpop.sfrf %366
  %p368 = scmp.eq.s32.totalorder %s367, 0
  %p369 = pneg %p368
  %371 = shalt.err (%p369)

</llo_original>
